<compile_context>
chip_gen: v5e
topology: v5e:2x2
jax: 0.10.0
libtpu: 0.0.40
codegen_flags: <defaults>
</compile_context>

<pallas_src>
import functools

import numpy as np
import jax
import jax.numpy as jnp
from jax.experimental import pallas as pl
from jax.experimental.pallas import tpu as pltpu


# --------------------------------------------------------------------------- #
# Kernel
# --------------------------------------------------------------------------- #
def attention_gate_kernel(g_ref, x_ref, wg_ref, wx_ref, wpsi_ref,
                          bias_ref, cpsi_ref, out_ref):
    # g_ref   : (BB, F_g, TILE_N)  gating features, input dtype (f32 or bf16)
    # x_ref   : (BB, F_l, TILE_N)  skip-connection features, input dtype
    # wg_ref  : (F_int, F_g) bf16  folded  BN_g(Conv1x1_g)  weight
    # wx_ref  : (F_int, F_l) bf16  folded  BN_x(Conv1x1_x)  weight
    # wpsi_ref: (1, F_int)   f32   folded  BN_psi(Conv1x1_psi) weight
    # bias_ref: (F_int, 1)   f32   combined folded bias of the two branches
    # cpsi_ref: (1,)         f32   folded psi bias (SMEM scalar)
    # out_ref : (BB, F_l, TILE_N)  output dtype (caller's activation dtype)
    bb = g_ref.shape[0]
    cdt = wg_ref.dtype                      # bf16 MXU compute dtype

    g = g_ref[...]
    x = x_ref[...]

    # Two 1x1 convs (+ folded BN) fused into the hidden pre-activation.
    # In-register cast to bf16 (VPU) feeding batched MXU matmuls with f32 acc.
    wg = jnp.broadcast_to(wg_ref[...][None], (bb,) + wg_ref.shape)
    wx = jnp.broadcast_to(wx_ref[...][None], (bb,) + wx_ref.shape)
    h = jnp.einsum('boi,bin->bon', wg, g.astype(cdt),
                   preferred_element_type=jnp.float32)
    h = h + jnp.einsum('boi,bin->bon', wx, x.astype(cdt),
                       preferred_element_type=jnp.float32)
    h = jnp.maximum(h + bias_ref[...][None], 0.0)          # folded bias + ReLU

    # psi head: 1x1 conv to one channel (kept in f32 for precision; it is a
    # single-output-channel matmul, so the extra MXU cost is negligible).
    wpsi = jnp.broadcast_to(wpsi_ref[...][None], (bb,) + wpsi_ref.shape)
    psi = jnp.einsum('boi,bin->bon', wpsi, h,
                     preferred_element_type=jnp.float32)    # (BB, 1, TILE_N)
    psi = jax.nn.sigmoid(psi + cpsi_ref[0])                 # SMEM scalar bias

    # Gate the skip features; lane-dense store in the caller's dtype.
    out_ref[...] = (x.astype(jnp.float32) * psi).astype(out_ref.dtype)


# --------------------------------------------------------------------------- #
# Parameter folding (conv bias + eval-mode BatchNorm)
# --------------------------------------------------------------------------- #
def prepare_attention_params(p, eps=1e-5, compute_dtype=jnp.bfloat16):
    """One-time fold of conv bias + eval-mode BatchNorm into kernel weights."""
    def fold(wkey, bkey, prefix):
        scale = p[prefix + '_gamma'] / jnp.sqrt(p[prefix + '_var'] + eps)
        w = p[wkey][:, :, 0, 0] * scale[:, None]                   # (O, I)
        b = scale * (p[bkey] - p[prefix + '_mean']) + p[prefix + '_beta']
        return w, b

    wg, bg = fold('wg', 'bg', 'bng')
    wx, bx = fold('wx', 'bx', 'bnx')
    wpsi, bpsi = fold('wpsi', 'bpsi', 'bnp')

    return {
        'wg': wg.astype(compute_dtype),                    # (F_int, F_g) bf16
        'wx': wx.astype(compute_dtype),                    # (F_int, F_l) bf16
        'wpsi': wpsi.astype(jnp.float32),                  # (1, F_int)   f32
        'bias': (bg + bx)[:, None].astype(jnp.float32),    # (F_int, 1)   f32
        'cpsi': bpsi.reshape(1,).astype(jnp.float32),      # (1,)  f32 -> SMEM
    }


# --------------------------------------------------------------------------- #
# Tiling / VMEM budgeting
# --------------------------------------------------------------------------- #
def _round_up(x, m):
    return (x + m - 1) // m * m


def _vmem_budget_bytes():
    """Per-generation scoped-VMEM budget (v5e/v6e ~96 MiB, v7x ~48 MiB)."""
    default_cap = 64 * 1024 * 1024                 # conservative (v7x physical)
    try:
        info = pltpu.get_tpu_info()
        cap = int(getattr(info, "vmem_capacity_bytes", default_cap) or default_cap)
    except Exception:
        cap = default_cap
    return min(int(cap * 0.75), 100 * 1024 * 1024)


def _pick_tile_n(hw, cap_elems):
    """Spatial tile (multiple of 128) and padded H*W, within a lane budget."""
    cap = max(128, (cap_elems // 128) * 128)
    hw128 = _round_up(hw, 128)
    if hw128 <= cap:
        return hw128, hw128                        # one lane-dense tile
    # Largest 128-multiple divisor of the padded extent that fits the budget.
    best, t = 128, 128
    while t <= cap:
        if hw128 % t == 0:
            best = t
        t += 128
    if best >= cap // 2:
        return best, hw128
    # No decent divisor: use the full budget as the tile and pad up to it.
    return cap, _round_up(hw, cap)


def _choose_tiling(B, HW, F_g, F_l, F_int, in_bytes, out_bytes, vmem_limit,
                   tile_n=None, batch_block=None):
    """Pick (tile_n, padded HW, batch block) from the VMEM budget."""
    # Compiler-managed VMEM per spatial element per batch row:
    #   double-buffered pipelined blocks + in-kernel intermediates.
    per_elem = (2 * (F_g + F_l) * in_bytes     # g, x blocks (double buffered)
                + 2 * F_l * out_bytes          # output block (double buffered)
                + (F_g + F_l) * 2              # in-register bf16 casts
                + F_int * 4 + 4                # h, psi (f32)
                + F_l * 4)                     # f32 x for the gating multiply
    weight_bytes = 2 * (F_int * (F_g + F_l) * 2 + 2 * F_int * 4)
    budget_elems = max(128, (int(vmem_limit * 0.75) - weight_bytes) // per_elem)

    if tile_n is None:
        tile_n, hw_pad = _pick_tile_n(HW, budget_elems)
    else:
        assert tile_n % 128 == 0, "tile_n must be a multiple of 128"
        hw_pad = _round_up(HW, tile_n)

    # Batch blocking: target >= ~1 MiB of HBM traffic per grid step.
    step_bytes_per_batch = tile_n * ((F_g + F_l) * in_bytes + F_l * out_bytes)
    if batch_block is None:
        target = 1 << 20
        bb = 1
        for cand in range(1, B + 1):
            if B % cand:
                continue
            if cand * tile_n > budget_elems:
                break
            bb = cand
            if cand * step_bytes_per_batch >= target:
                break
        batch_block = bb
    assert B % batch_block == 0

    # Megacore balance: keep >= 2 grid steps when possible (v7x has 2 TCs).
    def steps(bb, tn):
        return (B // bb) * (hw_pad // tn)

    if steps(batch_block, tile_n) < 2 and batch_block > 1:
        for cand in range(batch_block - 1, 0, -1):
            if B % cand == 0:
                batch_block = cand
                break
    if steps(batch_block, tile_n) < 2 and tile_n >= 256 and tile_n % 256 == 0:
        tile_n //= 2
        hw_pad = _round_up(HW, tile_n)

    return tile_n, hw_pad, batch_block


# --------------------------------------------------------------------------- #
# Wrapper
# --------------------------------------------------------------------------- #
def attention_forward(g, x, prep, *, tile_n=None, batch_block=None,
                      out_dtype=None, interpret=False):
    """g: (B, F_g, H, W), x: (B, F_l, H, W) NCHW. Returns (B, F_l, H, W)."""
    B, F_g, H, W = g.shape
    Bx, F_l, Hx, Wx = x.shape
    assert (B, H, W) == (Bx, Hx, Wx), "g and x must share batch / spatial dims"
    F_int = prep['wg'].shape[0]
    HW = H * W
    out_dtype = jnp.dtype(x.dtype if out_dtype is None else out_dtype)

    in_bytes = jnp.dtype(g.dtype).itemsize
    out_bytes = out_dtype.itemsize
    vmem_limit = _vmem_budget_bytes()
    tile_n, hw_pad, bb = _choose_tiling(
        B, HW, F_g, F_l, F_int, in_bytes, out_bytes, vmem_limit,
        tile_n=tile_n, batch_block=batch_block)

    # NCHW -> (B, C, H*W): pure reshape (no relayout, no dtype convert pass).
    g2 = g.reshape(B, F_g, HW)
    x2 = x.reshape(B, F_l, HW)
    if hw_pad != HW:
        pad = hw_pad - HW
        g2 = jnp.pad(g2, ((0, 0), (0, 0), (0, pad)))
        x2 = jnp.pad(x2, ((0, 0), (0, 0), (0, pad)))

    grid = (B // bb, hw_pad // tile_n)
    out = pl.pallas_call(
        attention_gate_kernel,
        out_shape=jax.ShapeDtypeStruct((B, F_l, hw_pad), out_dtype),
        grid_spec=pltpu.PrefetchScalarGridSpec(
            num_scalar_prefetch=0,
            grid=grid,
            in_specs=[
                pl.BlockSpec((bb, F_g, tile_n), lambda b, t: (b, 0, t)),
                pl.BlockSpec((bb, F_l, tile_n), lambda b, t: (b, 0, t)),
                pl.BlockSpec((F_int, F_g), lambda b, t: (0, 0)),
                pl.BlockSpec((F_int, F_l), lambda b, t: (0, 0)),
                pl.BlockSpec((1, F_int), lambda b, t: (0, 0)),
                pl.BlockSpec((F_int, 1), lambda b, t: (0, 0)),
                pl.BlockSpec(memory_space=pltpu.MemorySpace.SMEM),
            ],
            out_specs=pl.BlockSpec((bb, F_l, tile_n), lambda b, t: (b, 0, t)),
        ),
        compiler_params=pltpu.CompilerParams(
            dimension_semantics=("parallel", "parallel"),
            vmem_limit_bytes=int(vmem_limit),
        ),
        interpret=interpret,
    )(g2, x2, prep['wg'], prep['wx'], prep['wpsi'], prep['bias'], prep['cpsi'])

    if hw_pad != HW:
        out = out[:, :, :HW]
    return out.reshape(B, F_l, H, W)


# --------------------------------------------------------------------------- #
# Pure-JAX reference + parameter construction
# --------------------------------------------------------------------------- #
def attention_reference(g, x, p, eps=1e-5):
    """Pure-JAX f32 reference mirroring the PyTorch forward (eval-mode BN)."""
    def conv1x1(inp, w, b):
        return jnp.einsum('oi,bihw->bohw', w[:, :, 0, 0], inp) + b[None, :, None, None]

    def bn(y, prefix):
        scale = p[prefix + '_gamma'] / jnp.sqrt(p[prefix + '_var'] + eps)
        shift = p[prefix + '_beta'] - p[prefix + '_mean'] * scale
        return y * scale[None, :, None, None] + shift[None, :, None, None]

    g1 = bn(conv1x1(g, p['wg'], p['bg']), 'bng')
    x1 = bn(conv1x1(x, p['wx'], p['bx']), 'bnx')
    h = jax.nn.relu(g1 + x1)
    psi = jax.nn.sigmoid(bn(conv1x1(h, p['wpsi'], p['bpsi']), 'bnp'))
    return x * psi


def make_params(key, F_g, F_l, F_int):
    ks = jax.random.split(key, 9)
    p = {
        'wg': 0.1 * jax.random.normal(ks[0], (F_int, F_g, 1, 1), jnp.float32),
        'bg': 0.1 * jax.random.normal(ks[1], (F_int,), jnp.float32),
        'wx': 0.1 * jax.random.normal(ks[2], (F_int, F_l, 1, 1), jnp.float32),
        'bx': 0.1 * jax.random.normal(ks[3], (F_int,), jnp.float32),
        'wpsi': 0.1 * jax.random.normal(ks[4], (1, F_int, 1, 1), jnp.float32),
        'bpsi': 0.1 * jax.random.normal(ks[5], (1,), jnp.float32),
    }
    for i, (prefix, C) in enumerate((('bng', F_int), ('bnx', F_int), ('bnp', 1))):
        k0, k1, k2, k3 = jax.random.split(ks[6 + i], 4)
        p[prefix + '_gamma'] = 1.0 + 0.1 * jax.random.normal(k0, (C,), jnp.float32)
        p[prefix + '_beta'] = 0.1 * jax.random.normal(k1, (C,), jnp.float32)
        p[prefix + '_mean'] = 0.1 * jax.random.normal(k2, (C,), jnp.float32)
        p[prefix + '_var'] = 0.5 + jnp.abs(jax.random.normal(k3, (C,), jnp.float32))
    return p


if __name__ == "__main__":
    key = jax.random.PRNGKey(0)

    # ---- Config 1: Attention_block(F_g=8, F_l=8, F_int=4); (B, C, 16, 16) ----
    # Default (VMEM-derived) tiling; f32 output matching the f32 inputs.
    B, F_g, F_l, F_int, H, W = 2, 8, 8, 4, 16, 16
    kg, kx, kp, key = jax.random.split(key, 4)
    g = jax.random.normal(kg, (B, F_g, H, W), jnp.float32)
    x = jax.random.normal(kx, (B, F_l, H, W), jnp.float32)
    params = make_params(kp, F_g, F_l, F_int)
    prep = prepare_attention_params(params)           # one-time BN fold

    fwd = jax.jit(attention_forward)
    out = jax.block_until_ready(fwd(g, x, prep))       # (B, F_l, H, W)
    ref = attention_reference(g, x, params)
    assert np.allclose(np.asarray(out, dtype=np.float32), np.asarray(ref),
                       rtol=2e-2, atol=2e-2), \
        "Pallas Attention_block output mismatch vs reference (config 1)"

    # ---- Config 2: non-128-divisible H*W (padding path), batch blocking, ----
    # ---- explicit spatial tiles and bf16 output (reduced writeback).      ----
    B2, H2, W2 = 3, 15, 15
    kg, kx, kp, key = jax.random.split(key, 4)
    g2 = jax.random.normal(kg, (B2, F_g, H2, W2), jnp.float32)
    x2 = jax.random.normal(kx, (B2, F_l, H2, W2), jnp.float32)
    params2 = make_params(kp, F_g, F_l, F_int)
    prep2 = prepare_attention_params(params2)

    fwd2 = jax.jit(functools.partial(attention_forward, tile_n=128,
                                     out_dtype=jnp.bfloat16))
    out2 = jax.block_until_ready(fwd2(g2, x2, prep2))
    ref2 = attention_reference(g2, x2, params2)
    assert np.allclose(np.asarray(out2, dtype=np.float32), np.asarray(ref2),
                       rtol=3e-2, atol=3e-2), \
        "Pallas Attention_block output mismatch vs reference (config 2)"

    # TODO(synk): training-mode BatchNorm (batch statistics) is not implemented;
    # the kernel uses eval-mode folded running stats.
    print("KERNEL_OK")
</pallas_src>

<mosaic_0001>
module attributes {stable_mosaic.version = 11 : i64} {
  func.func @attention_gate_kernel(%arg0: i32, %arg1: i32, %arg2: memref<1x8x256xf32, #tpu.memory_space<vmem>>, %arg3: memref<1x8x256xf32, #tpu.memory_space<vmem>>, %arg4: memref<4x8xbf16, #tpu.memory_space<vmem>>, %arg5: memref<4x8xbf16, #tpu.memory_space<vmem>>, %arg6: memref<1x4xf32, #tpu.memory_space<vmem>>, %arg7: memref<4x1xf32, #tpu.memory_space<vmem>>, %arg8: memref<1xf32, #tpu.memory_space<smem>>, %arg9: memref<1x8x256xf32, #tpu.memory_space<vmem>>) attributes {dimension_semantics = [#tpu.dimension_semantics<parallel>, #tpu.dimension_semantics<parallel>], iteration_bounds = array<i64: 2, 1>, scalar_prefetch = 0 : i64, scratch_operands = 0 : i64, tpu.core_type = #tpu.core_type<tc>, window_params = [{transform_indices = @transform_0, window_bounds = array<i64: 1, 8, 256>}, {transform_indices = @transform_1, window_bounds = array<i64: 1, 8, 256>}, {pipeline_mode = #tpu.pipeline_mode<synchronous>, transform_indices = @transform_2, window_bounds = array<i64: 4, 8>}, {pipeline_mode = #tpu.pipeline_mode<synchronous>, transform_indices = @transform_3, window_bounds = array<i64: 4, 8>}, {pipeline_mode = #tpu.pipeline_mode<synchronous>, transform_indices = @transform_4, window_bounds = array<i64: 1, 4>}, {pipeline_mode = #tpu.pipeline_mode<synchronous>, transform_indices = @transform_5, window_bounds = array<i64: 4, 1>}, {transform_indices = @transform_6, window_bounds = array<i64: 1>}, {transform_indices = @transform_7, window_bounds = array<i64: 1, 8, 256>}]} {
    %c0 = arith.constant 0 : index
    %c0_0 = arith.constant 0 : index
    %c0_1 = arith.constant 0 : index
    %0 = vector.load %arg2[%c0, %c0_0, %c0_1] : memref<1x8x256xf32, #tpu.memory_space<vmem>>, vector<1x8x256xf32>
    %c0_2 = arith.constant 0 : index
    %c0_3 = arith.constant 0 : index
    %c0_4 = arith.constant 0 : index
    %1 = vector.load %arg3[%c0_2, %c0_3, %c0_4] : memref<1x8x256xf32, #tpu.memory_space<vmem>>, vector<1x8x256xf32>
    %c0_5 = arith.constant 0 : index
    %c0_6 = arith.constant 0 : index
    %2 = vector.load %arg4[%c0_5, %c0_6] : memref<4x8xbf16, #tpu.memory_space<vmem>>, vector<4x8xbf16>
    %3 = vector.shape_cast %2 : vector<4x8xbf16> to vector<1x4x8xbf16>
    %c0_7 = arith.constant 0 : index
    %c0_8 = arith.constant 0 : index
    %4 = vector.load %arg5[%c0_7, %c0_8] : memref<4x8xbf16, #tpu.memory_space<vmem>>, vector<4x8xbf16>
    %5 = vector.shape_cast %4 : vector<4x8xbf16> to vector<1x4x8xbf16>
    %6 = arith.truncf %0 : vector<1x8x256xf32> to vector<1x8x256xbf16>
    "tpu.trace_start"() <{level = 10 : i32, message = "boi,bin->bon"}> : () -> ()
    %cst = arith.constant dense<0.000000e+00> : vector<1x4x256xf32>
    %7 = tpu.matmul %3, %6, %cst {dimension_numbers = #tpu.dot_dimension_numbers<[2], [1], [1], [2], [0, 0, 0, 1, 1, 2], [0], [0]>} : vector<1x4x8xbf16>, vector<1x8x256xbf16>, vector<1x4x256xf32> -> vector<1x4x256xf32>
    "tpu.trace_stop"() : () -> ()
    %8 = arith.truncf %1 : vector<1x8x256xf32> to vector<1x8x256xbf16>
    "tpu.trace_start"() <{level = 10 : i32, message = "boi,bin->bon"}> : () -> ()
    %cst_9 = arith.constant dense<0.000000e+00> : vector<1x4x256xf32>
    %9 = tpu.matmul %5, %8, %cst_9 {dimension_numbers = #tpu.dot_dimension_numbers<[2], [1], [1], [2], [0, 0, 0, 1, 1, 2], [0], [0]>} : vector<1x4x8xbf16>, vector<1x8x256xbf16>, vector<1x4x256xf32> -> vector<1x4x256xf32>
    "tpu.trace_stop"() : () -> ()
    %10 = arith.addf %7, %9 : vector<1x4x256xf32>
    %c0_10 = arith.constant 0 : index
    %c0_11 = arith.constant 0 : index
    %11 = vector.load %arg7[%c0_10, %c0_11] : memref<4x1xf32, #tpu.memory_space<vmem>>, vector<4x1xf32>
    %12 = vector.shape_cast %11 : vector<4x1xf32> to vector<1x4x1xf32>
    %13 = vector.broadcast %12 : vector<1x4x1xf32> to vector<1x4x256xf32>
    %14 = arith.addf %10, %13 : vector<1x4x256xf32>
    %cst_12 = arith.constant 0.000000e+00 : f32
    %15 = vector.broadcast %cst_12 : f32 to vector<1x4x256xf32>
    %16 = arith.maximumf %14, %15 : vector<1x4x256xf32>
    %c0_13 = arith.constant 0 : index
    %c0_14 = arith.constant 0 : index
    %17 = vector.load %arg6[%c0_13, %c0_14] : memref<1x4xf32, #tpu.memory_space<vmem>>, vector<1x4xf32>
    %18 = vector.shape_cast %17 : vector<1x4xf32> to vector<1x1x4xf32>
    "tpu.trace_start"() <{level = 10 : i32, message = "boi,bin->bon"}> : () -> ()
    %cst_15 = arith.constant dense<0.000000e+00> : vector<1x1x256xf32>
    %19 = tpu.matmul %18, %16, %cst_15 {dimension_numbers = #tpu.dot_dimension_numbers<[2], [1], [1], [2], [0, 0, 0, 1, 1, 2], [0], [0]>} : vector<1x1x4xf32>, vector<1x4x256xf32>, vector<1x1x256xf32> -> vector<1x1x256xf32>
    "tpu.trace_stop"() : () -> ()
    %c0_16 = arith.constant 0 : index
    %20 = memref.load %arg8[%c0_16] : memref<1xf32, #tpu.memory_space<smem>>
    %21 = vector.broadcast %20 : f32 to vector<1x1x256xf32>
    %22 = arith.addf %19, %21 : vector<1x1x256xf32>
    %23 = arith.negf %22 : vector<1x1x256xf32>
    %24 = math.exp %23 : vector<1x1x256xf32>
    %cst_17 = arith.constant 1.000000e+00 : f32
    %25 = vector.broadcast %cst_17 : f32 to vector<1x1x256xf32>
    %26 = arith.addf %25, %24 : vector<1x1x256xf32>
    %27 = arith.divf %25, %26 : vector<1x1x256xf32>
    %28 = vector.broadcast %27 : vector<1x1x256xf32> to vector<1x8x256xf32>
    %29 = arith.mulf %1, %28 : vector<1x8x256xf32>
    %c0_18 = arith.constant 0 : index
    %c0_19 = arith.constant 0 : index
    %c0_20 = arith.constant 0 : index
    %30 = vector.load %arg9[%c0_18, %c0_19, %c0_20] : memref<1x8x256xf32, #tpu.memory_space<vmem>>, vector<1x8x256xf32>
    tpu.vector_store %arg9[%c0_18, %c0_19, %c0_20], %29 {strides = array<i32>} : memref<1x8x256xf32, #tpu.memory_space<vmem>>, vector<1x8x256xf32>,
    return
  }
  func.func @transform_0(%arg0: i32, %arg1: i32) -> (i32, i32, i32) {
    %c0_i32 = arith.constant 0 : i32
    %c0_i32_0 = arith.constant 0 : i32
    return %arg0, %c0_i32, %arg1 : i32, i32, i32
  }
  func.func @transform_1(%arg0: i32, %arg1: i32) -> (i32, i32, i32) {
    %c0_i32 = arith.constant 0 : i32
    %c0_i32_0 = arith.constant 0 : i32
    return %arg0, %c0_i32, %arg1 : i32, i32, i32
  }
  func.func @transform_2(%arg0: i32, %arg1: i32) -> (i32, i32) {
    %c0_i32 = arith.constant 0 : i32
    %c0_i32_0 = arith.constant 0 : i32
    %c0_i32_1 = arith.constant 0 : i32
    return %c0_i32, %c0_i32_0 : i32, i32
  }
  func.func @transform_3(%arg0: i32, %arg1: i32) -> (i32, i32) {
    %c0_i32 = arith.constant 0 : i32
    %c0_i32_0 = arith.constant 0 : i32
    %c0_i32_1 = arith.constant 0 : i32
    return %c0_i32, %c0_i32_0 : i32, i32
  }
  func.func @transform_4(%arg0: i32, %arg1: i32) -> (i32, i32) {
    %c0_i32 = arith.constant 0 : i32
    %c0_i32_0 = arith.constant 0 : i32
    %c0_i32_1 = arith.constant 0 : i32
    return %c0_i32, %c0_i32_0 : i32, i32
  }
  func.func @transform_5(%arg0: i32, %arg1: i32) -> (i32, i32) {
    %c0_i32 = arith.constant 0 : i32
    %c0_i32_0 = arith.constant 0 : i32
    %c0_i32_1 = arith.constant 0 : i32
    return %c0_i32, %c0_i32_0 : i32, i32
  }
  func.func @transform_6(%arg0: i32, %arg1: i32) -> i32 {
    %c0_i32 = arith.constant 0 : i32
    %c0_i32_0 = arith.constant 0 : i32
    return %c0_i32 : i32
  }
  func.func @transform_7(%arg0: i32, %arg1: i32) -> (i32, i32, i32) {
    %c0_i32 = arith.constant 0 : i32
    %c0_i32_0 = arith.constant 0 : i32
    return %arg0, %c0_i32, %arg1 : i32, i32, i32
  }
}

</mosaic_0001>

<llo_original>
// kernel: attention_forward.1
$region0: #{attention_forward.1}
  #allocation0 [shape = 'u32[]', space=smem, size = 0x4, offset = 0x4, fixed_abs, tag = 'smem constant byte address 0x4 - core index']
  #allocation1 [shape = 'u32[72,128]{1,0:T(1,128)}', space=vmem, size = 0x9000, scoped, tag = 'internal scratch']
  #allocation2 [shape = 'f32[1]{0:T(128)S(6)}', space=smem, size = 0x200, scoped, tag = 'scoped memory for attention_forward.1']
  %s0 = inlined_call_operand.vmem [shape: f32[2,8,256], index: 0, kind: input, shape index: {}]
  %s1 = inlined_call_operand.vmem [shape: f32[2,8,256], index: 1, kind: input, shape index: {}]
  %s2 = inlined_call_operand.vmem [shape: bf16[4,8], index: 2, kind: input, shape index: {}]
  %s3 = inlined_call_operand.vmem [shape: bf16[4,8], index: 3, kind: input, shape index: {}]
  %s4 = inlined_call_operand.vmem [shape: f32[1,4], index: 4, kind: input, shape index: {}]
  %s5 = inlined_call_operand.vmem [shape: f32[4,1], index: 5, kind: input, shape index: {}]
  %s6 = inlined_call_operand.<no memory space> [shape: f32[1], index: 6, kind: input, shape index: {}]
  %s7 = inlined_call_operand.vmem [shape: f32[2,8,256], index: 7, kind: output, shape index: {}]
  %s8 = sld [smem:[#allocation0]]
  $region61: #{attention_forward.1} parent=0
    _
  %s10 = ssub.s32 1, %s8
  %s11 = scalar_select 0, %s10, %s8
  %12 = sst [smem:[#allocation2]] %s6
  loop: start=0, step=1, limit=4
  $region2: #{attention_forward.1} parent=0 // loop_pre_header
    _
  $region3: #{attention_forward.1} parent=0 // loop_header
    %s14 = sphi 0, %s18
    %p15 = scmp.ge.s32.totalorder %s14, 4
    %s21 = sphi 0, %s33
    %s22 = sphi 0, %s29
    %s23 = sphi 0, %s21
    %s24 = sphi 0, %s22
    %s25 = sphi 0, %s23
    %s26 = sphi 0, %s24
    %s38 = sphi 0, %s40
    %s41 = sphi 0, %s38
    %s42 = sphi 0, %s41
    %s58 = sphi 0, %s42
    %s66 = sphi 0, %s68
    %s69 = sphi 0, %s66
    %s70 = sphi 0, %s69
    %s86 = sphi 0, %s70
    %s90 = sphi 0, %s90
    %s92 = sphi 0, %s90
    %s93 = sphi 0, %s92
    %s107 = sphi 0, %s93
    %s111 = sphi 0, %s111
    %s113 = sphi 0, %s111
    %s114 = sphi 0, %s113
    %s128 = sphi 0, %s114
    %s132 = sphi 0, %s132
    %s134 = sphi 0, %s132
    %s135 = sphi 0, %s134
    %s149 = sphi 0, %s135
    %s153 = sphi 0, %s153
    %s155 = sphi 0, %s153
    %s156 = sphi 0, %s155
    %s170 = sphi 0, %s156
    %s174 = sphi 0, %s174
    %s176 = sphi 0, %s174
    %s177 = sphi 0, %s176
    %s191 = sphi 0, %s177
    %s199 = sphi 0, %s201
    %s202 = sphi 0, %s199
    %s203 = sphi 0, %s202
    %s219 = sphi 0, %s203
  $region4: #{attention_forward.1} parent=0 // loop_header_branch
    %17 = sbr.rel (%p15) target = $region8
  $region5: #{attention_forward.1} parent=0 // loop_body
    %s19 = ssub.s32 %s14, 1
    %s20 = ssub.s32 %s14, 2
    %s27 = sadd.s32 1, %s22
    %p28 = scmp.ge.s32.totalorder %s27, 1
    %s29 = scalar_select %p28, 0, %s27
    %s30 = sadd.s32 1, %s21
    %s31 = scalar_select %p28, %s30, %s21
    %p32 = scmp.ge.s32.totalorder %s31, 2
    %s33 = scalar_select %p32, 0, %s31
    %s34 = ssub.s32 %s21, %s33
    %s35 = ssub.s32 %s22, %s29
    %s36 = sor.u32 %s34, %s35
    %p37 = scmp.eq.s32.totalorder %s36, 0
    %s39 = sadd.s32 %s38, 1
    %s40 = scalar_select %p37, %s38, %s39
    %p43 = pneg %p37
    %p44 = scmp.eq.s32.totalorder %s14, 1
    %p45 = por %p43, %p44
    %p46 = scmp.ne.s32.totalorder %s38, %s41
    %p47 = scmp.eq.s32.totalorder %s14, 0
    %p48 = por %p46, %p47
    %p49 = scmp.ne.s32.totalorder %s38, %s41
    %p50 = scmp.eq.s32.totalorder %s19, 1
    %p51 = por %p49, %p50
    %p52 = scmp.ne.s32.totalorder %s41, %s42
    %p53 = scmp.eq.s32.totalorder %s19, 0
    %p54 = por %p52, %p53
    %p55 = scmp.ne.s32.totalorder %s41, %s42
    %p56 = scmp.eq.s32.totalorder %s20, 1
    %p57 = por %p55, %p56
    %p59 = scmp.ne.s32.totalorder %s42, %s58
    %p60 = scmp.eq.s32.totalorder %s20, 0
    %p61 = por %p59, %p60
    %s62 = ssub.s32 %s21, %s33
    %s63 = ssub.s32 %s22, %s29
    %s64 = sor.u32 %s62, %s63
    %p65 = scmp.eq.s32.totalorder %s64, 0
    %s67 = sadd.s32 %s66, 1
    %s68 = scalar_select %p65, %s66, %s67
    %p71 = pneg %p65
    %p72 = scmp.eq.s32.totalorder %s14, 1
    %p73 = por %p71, %p72
    %p74 = scmp.ne.s32.totalorder %s66, %s69
    %p75 = scmp.eq.s32.totalorder %s14, 0
    %p76 = por %p74, %p75
    %p77 = scmp.ne.s32.totalorder %s66, %s69
    %p78 = scmp.eq.s32.totalorder %s19, 1
    %p79 = por %p77, %p78
    %p80 = scmp.ne.s32.totalorder %s69, %s70
    %p81 = scmp.eq.s32.totalorder %s19, 0
    %p82 = por %p80, %p81
    %p83 = scmp.ne.s32.totalorder %s69, %s70
    %p84 = scmp.eq.s32.totalorder %s20, 1
    %p85 = por %p83, %p84
    %p87 = scmp.ne.s32.totalorder %s70, %s86
    %p88 = scmp.eq.s32.totalorder %s20, 0
    %p89 = por %p87, %p88
    %s91 = sadd.s32 %s90, 1
    %p94 = scmp.eq.s32.totalorder %s14, 1
    %p95 = scmp.ne.s32.totalorder %s90, %s92
    %p96 = scmp.eq.s32.totalorder %s14, 0
    %p97 = por %p95, %p96
    %p98 = scmp.ne.s32.totalorder %s90, %s92
    %p99 = scmp.eq.s32.totalorder %s19, 1
    %p100 = por %p98, %p99
    %p101 = scmp.ne.s32.totalorder %s92, %s93
    %p102 = scmp.eq.s32.totalorder %s19, 0
    %p103 = por %p101, %p102
    %p104 = scmp.ne.s32.totalorder %s92, %s93
    %p105 = scmp.eq.s32.totalorder %s20, 1
    %p106 = por %p104, %p105
    %p108 = scmp.ne.s32.totalorder %s93, %s107
    %p109 = scmp.eq.s32.totalorder %s20, 0
    %p110 = por %p108, %p109
    %s112 = sadd.s32 %s111, 1
    %p115 = scmp.eq.s32.totalorder %s14, 1
    %p116 = scmp.ne.s32.totalorder %s111, %s113
    %p117 = scmp.eq.s32.totalorder %s14, 0
    %p118 = por %p116, %p117
    %p119 = scmp.ne.s32.totalorder %s111, %s113
    %p120 = scmp.eq.s32.totalorder %s19, 1
    %p121 = por %p119, %p120
    %p122 = scmp.ne.s32.totalorder %s113, %s114
    %p123 = scmp.eq.s32.totalorder %s19, 0
    %p124 = por %p122, %p123
    %p125 = scmp.ne.s32.totalorder %s113, %s114
    %p126 = scmp.eq.s32.totalorder %s20, 1
    %p127 = por %p125, %p126
    %p129 = scmp.ne.s32.totalorder %s114, %s128
    %p130 = scmp.eq.s32.totalorder %s20, 0
    %p131 = por %p129, %p130
    %s133 = sadd.s32 %s132, 1
    %p136 = scmp.eq.s32.totalorder %s14, 1
    %p137 = scmp.ne.s32.totalorder %s132, %s134
    %p138 = scmp.eq.s32.totalorder %s14, 0
    %p139 = por %p137, %p138
    %p140 = scmp.ne.s32.totalorder %s132, %s134
    %p141 = scmp.eq.s32.totalorder %s19, 1
    %p142 = por %p140, %p141
    %p143 = scmp.ne.s32.totalorder %s134, %s135
    %p144 = scmp.eq.s32.totalorder %s19, 0
    %p145 = por %p143, %p144
    %p146 = scmp.ne.s32.totalorder %s134, %s135
    %p147 = scmp.eq.s32.totalorder %s20, 1
    %p148 = por %p146, %p147
    %p150 = scmp.ne.s32.totalorder %s135, %s149
    %p151 = scmp.eq.s32.totalorder %s20, 0
    %p152 = por %p150, %p151
    %s154 = sadd.s32 %s153, 1
    %p157 = scmp.eq.s32.totalorder %s14, 1
    %p158 = scmp.ne.s32.totalorder %s153, %s155
    %p159 = scmp.eq.s32.totalorder %s14, 0
    %p160 = por %p158, %p159
    %p161 = scmp.ne.s32.totalorder %s153, %s155
    %p162 = scmp.eq.s32.totalorder %s19, 1
    %p163 = por %p161, %p162
    %p164 = scmp.ne.s32.totalorder %s155, %s156
    %p165 = scmp.eq.s32.totalorder %s19, 0
    %p166 = por %p164, %p165
    %p167 = scmp.ne.s32.totalorder %s155, %s156
    %p168 = scmp.eq.s32.totalorder %s20, 1
    %p169 = por %p167, %p168
    %p171 = scmp.ne.s32.totalorder %s156, %s170
    %p172 = scmp.eq.s32.totalorder %s20, 0
    %p173 = por %p171, %p172
    %s175 = sadd.s32 %s174, 1
    %p178 = scmp.eq.s32.totalorder %s14, 1
    %p179 = scmp.ne.s32.totalorder %s174, %s176
    %p180 = scmp.eq.s32.totalorder %s14, 0
    %p181 = por %p179, %p180
    %p182 = scmp.ne.s32.totalorder %s174, %s176
    %p183 = scmp.eq.s32.totalorder %s19, 1
    %p184 = por %p182, %p183
    %p185 = scmp.ne.s32.totalorder %s176, %s177
    %p186 = scmp.eq.s32.totalorder %s19, 0
    %p187 = por %p185, %p186
    %p188 = scmp.ne.s32.totalorder %s176, %s177
    %p189 = scmp.eq.s32.totalorder %s20, 1
    %p190 = por %p188, %p189
    %p192 = scmp.ne.s32.totalorder %s177, %s191
    %p193 = scmp.eq.s32.totalorder %s20, 0
    %p194 = por %p192, %p193
    %s195 = ssub.s32 %s21, %s33
    %s196 = ssub.s32 %s22, %s29
    %s197 = sor.u32 %s195, %s196
    %p198 = scmp.eq.s32.totalorder %s197, 0
    %s200 = sadd.s32 %s199, 1
    %s201 = scalar_select %p198, %s199, %s200
    %p204 = pneg %p198
    %p205 = scmp.eq.s32.totalorder %s14, 1
    %p206 = por %p204, %p205
    %p207 = scmp.ne.s32.totalorder %s199, %s202
    %p208 = scmp.eq.s32.totalorder %s14, 0
    %p209 = por %p207, %p208
    %p210 = scmp.ne.s32.totalorder %s199, %s202
    %p211 = scmp.eq.s32.totalorder %s19, 1
    %p212 = por %p210, %p211
    %p213 = scmp.ne.s32.totalorder %s202, %s203
    %p214 = scmp.eq.s32.totalorder %s19, 0
    %p215 = por %p213, %p214
    %p216 = scmp.ne.s32.totalorder %s202, %s203
    %p217 = scmp.eq.s32.totalorder %s20, 1
    %p218 = por %p216, %p217
    %p220 = scmp.ne.s32.totalorder %s203, %s219
    %p221 = scmp.eq.s32.totalorder %s20, 0
    %p222 = por %p220, %p221
    %p223 = scmp.le.s32.totalorder 1, %s14
    %p224 = scmp.lt.s32.totalorder %s14, 3
    %p225 = pnand %p223, %p224
    %p226 = pneg %p225
    // Predicated region
    $region9: #{attention_forward.1} parent=5 // pred_check
      _
    $region10: #{attention_forward.1} parent=5 // pred_check_branch
      %228 = sbr.rel (%p225) target = $region12
    $region11: #{attention_forward.1} parent=5 // pred_region
      %s229 = ssub.s32 %s14, 1
      // Predicated region
      $region13: #{attention_forward.1} parent=11 // pred_check
        %p230 = pneg %p103
      $region14: #{attention_forward.1} parent=11 // pred_check_branch
        %232 = sbr.rel (%p230) target = $region16
      $region15: #{attention_forward.1} parent=11 // pred_region
        _
      $region16: #{attention_forward.1} parent=11 // pred_fallthru
        _
      // Predicated region
      $region17: #{attention_forward.1} parent=11 // pred_check
        %p233 = pneg %p124
      $region18: #{attention_forward.1} parent=11 // pred_check_branch
        %235 = sbr.rel (%p233) target = $region20
      $region19: #{attention_forward.1} parent=11 // pred_region
        _
      $region20: #{attention_forward.1} parent=11 // pred_fallthru
        _
      // Predicated region
      $region21: #{attention_forward.1} parent=11 // pred_check
        %p236 = pneg %p145
      $region22: #{attention_forward.1} parent=11 // pred_check_branch
        %238 = sbr.rel (%p236) target = $region24
      $region23: #{attention_forward.1} parent=11 // pred_region
        _
      $region24: #{attention_forward.1} parent=11 // pred_fallthru
        _
      // Predicated region
      $region25: #{attention_forward.1} parent=11 // pred_check
        %p239 = pneg %p166
      $region26: #{attention_forward.1} parent=11 // pred_check_branch
        %241 = sbr.rel (%p239) target = $region28
      $region27: #{attention_forward.1} parent=11 // pred_region
        _
      $region28: #{attention_forward.1} parent=11 // pred_fallthru
        _
      // Predicated region
      $region29: #{attention_forward.1} parent=11 // pred_check
        %p242 = pneg %p187
      $region30: #{attention_forward.1} parent=11 // pred_check_branch
        %244 = sbr.rel (%p242) target = $region32
      $region31: #{attention_forward.1} parent=11 // pred_region
        _
      $region32: #{attention_forward.1} parent=11 // pred_fallthru
        _
    $region12: #{attention_forward.1} parent=5 // pred_fallthru
      _
    %p245 = scmp.lt.s32.totalorder %s14, 2
    // Predicated region
    $region33: #{attention_forward.1} parent=5 // pred_check
      %p246 = pneg %p245
    $region34: #{attention_forward.1} parent=5 // pred_check_branch
      %248 = sbr.rel (%p246) target = $region36
    $region35: #{attention_forward.1} parent=5 // pred_region
      // Predicated region
      $region37: #{attention_forward.1} parent=35 // pred_check
        %p249 = pneg %p48
      $region38: #{attention_forward.1} parent=35 // pred_check_branch
        %251 = sbr.rel (%p249) target = $region40
      $region39: #{attention_forward.1} parent=35 // pred_region
        %s252 = smul.u32 2, %s22
        %p253 = scmp.lt.s32.totalorder %s21, 1
        %s254 = scalar_select %p253, %s21, 1
        %p255 = scmp.lt.s32.totalorder %s252, 1
        %s256 = scalar_select %p255, %s252, 1
        %s257 = smul.addr %s254, 2
        %s258 = sadd.s32 %s256, %s257
        %s259 = smul.addr %s258, 8
        %s260 = scalar_lea.vmem %s0, %s259
        %s261 = smul.u32 2, %s22
      $region40: #{attention_forward.1} parent=35 // pred_fallthru
        _
      // Predicated region
      $region41: #{attention_forward.1} parent=35 // pred_check
        %p262 = pneg %p76
      $region42: #{attention_forward.1} parent=35 // pred_check_branch
        %264 = sbr.rel (%p262) target = $region44
      $region43: #{attention_forward.1} parent=35 // pred_region
        %s265 = smul.u32 2, %s22
        %p266 = scmp.lt.s32.totalorder %s21, 1
        %s267 = scalar_select %p266, %s21, 1
        %p268 = scmp.lt.s32.totalorder %s265, 1
        %s269 = scalar_select %p268, %s265, 1
        %s270 = smul.addr %s267, 2
        %s271 = sadd.s32 %s269, %s270
        %s272 = smul.addr %s271, 8
        %s273 = scalar_lea.vmem %s1, %s272
        %s274 = smul.u32 2, %s22
      $region44: #{attention_forward.1} parent=35 // pred_fallthru
        _
    $region36: #{attention_forward.1} parent=5 // pred_fallthru
      _
    %p275 = scmp.le.s32.totalorder 1, %s14
    %p276 = scmp.lt.s32.totalorder %s14, 3
    %p277 = pnand %p275, %p276
    %p278 = pneg %p277
    // Predicated region
    $region45: #{attention_forward.1} parent=5 // pred_check
      _
    $region46: #{attention_forward.1} parent=5 // pred_check_branch
      %280 = sbr.rel (%p277) target = $region48
    $region47: #{attention_forward.1} parent=5 // pred_region
      %s281 = ssub.s32 %s14, 1
      %s282 = smul.u32 2, %s24
      %p283 = scmp.lt.s32.totalorder %s23, 1
      %s284 = scalar_select %p283, %s23, 1
      %p285 = scmp.lt.s32.totalorder %s282, 1
      %s286 = scalar_select %p285, %s282, 1
      %s287 = smul.addr %s284, 2
      %s288 = sadd.s32 %s286, %s287
      %s289 = smul.addr %s288, 8
      %s290 = scalar_lea.vmem %s0, %s289
      %p291 = pneg %p54
      %p292 = pneg %p51
      %s293 = smul.u32 2, %s24
      %p294 = scmp.lt.s32.totalorder %s23, 1
      %s295 = scalar_select %p294, %s23, 1
      %p296 = scmp.lt.s32.totalorder %s293, 1
      %s297 = scalar_select %p296, %s293, 1
      %s298 = smul.addr %s295, 2
      %s299 = sadd.s32 %s297, %s298
      %s300 = smul.addr %s299, 8
      %s301 = scalar_lea.vmem %s1, %s300
      %p302 = pneg %p82
      %p303 = pneg %p79
      %p304 = pneg %p103
      %p305 = pneg %p100
      %p306 = pneg %p124
      %p307 = pneg %p121
      %p308 = pneg %p145
      %p309 = pneg %p142
      %p310 = pneg %p166
      %p311 = pneg %p163
      %p312 = pneg %p187
      %p313 = pneg %p184
      %p314 = pneg %p215
      %p315 = pneg %p212
      %s316 = smul.u32 2, %s24
      %p317 = scmp.lt.s32.totalorder %s23, 1
      %s318 = scalar_select %p317, %s23, 1
      %p319 = scmp.lt.s32.totalorder %s316, 1
      %s320 = scalar_select %p319, %s316, 1
      %s321 = smul.addr %s318, 2
      %s322 = sadd.s32 %s320, %s321
      %s323 = smul.addr %s322, 8
      %s324 = scalar_lea.vmem %s7, %s323
      %s325 = smul.u32 2, %s24
      %p326 = scmp.lt.s32.totalorder %s23, 1
      %s327 = scalar_select %p326, %s23, 1
      %p328 = scmp.lt.s32.totalorder %s325, 1
      %s329 = scalar_select %p328, %s325, 1
      %s330 = smul.addr %s327, 2
      %s331 = sadd.s32 %s329, %s330
      %s332 = smul.addr %s331, 8
      %s333 = scalar_lea.vmem %s0, %s332
      %s334 = smul.u32 2, %s24
      %s335 = smul.u32 2, %s24
      %p336 = scmp.lt.s32.totalorder %s23, 1
      %s337 = scalar_select %p336, %s23, 1
      %p338 = scmp.lt.s32.totalorder %s335, 1
      %s339 = scalar_select %p338, %s335, 1
      %s340 = smul.addr %s337, 2
      %s341 = sadd.s32 %s339, %s340
      %s342 = smul.addr %s341, 8
      %s343 = scalar_lea.vmem %s1, %s342
      %s344 = smul.u32 2, %s24
      %s345 = smul.u32 2, %s24
      %p346 = scmp.lt.s32.totalorder %s23, 1
      %s347 = scalar_select %p346, %s23, 1
      %p348 = scmp.lt.s32.totalorder %s345, 1
      %s349 = scalar_select %p348, %s345, 1
      %s350 = smul.addr %s347, 2
      %s351 = sadd.s32 %s349, %s350
      %s352 = smul.addr %s351, 8
      %s353 = scalar_lea.vmem %s7, %s352
      %s354 = smul.u32 2, %s24
      %v356 = vld [vmem:[%s333] sm:$0xff]
      %v357 = vld [vmem:[%s333 + $0x8] sm:$0xff]
      %v358 = vld [vmem:[%s343] sm:$0xff]
      %v359 = vld [vmem:[%s343 + $0x8] sm:$0xff]
      %v360 = vld [vmem:[%s2] sm:$0x3]
      %v361 = vld [vmem:[%s3] sm:$0x3]
      %v362 = vpack.c.bf16 %v357, %v356
      %v363 = vpack.c.bf16 %v359, %v358
      %v365 = vunpack.c.l.b16 %v363
      %v366 = vunpack.c.h.b16 %v363
      %v367 = vpack.c.b16 %v365, %v365
      %v368 = vpack.c.b16 %v366, %v366
      %vm369 = vcmask 64512
      %v371 = vsel %vm369, %v361, 0
      %vm373 = vcmask 1043456
      %v375 = vsel %vm373, %v367, 0
      %v378 = vsel %vm373, %v368, 0
      %380 = vmatpush.bf16.msra.mxu0 0
      %381 = vmatpush.bf16.msra.mxu0 0
      %382 = vmatpush.bf16.msra.mxu0 0
      %383 = vmatpush.bf16.msra.mxu0 0
      %384 = vmatpush.bf16.msra.mxu0 0
      %385 = vmatpush.bf16.msra.mxu0 0
      %386 = vmatpush.bf16.msra.mxu0 0
      %387 = vmatpush.bf16.msra.mxu0 %v375
      %388 = vmatmul.bf16.gmra.mxu0 %v371
      %v389 = vpop.f32.mrf.mxu0
      %v390 = vadd.f32 0.0, %v389
      %v391 = vpop.f32.mrf.mxu0
      %392 = vdwg.mxu0
      %393 = vmatpush.bf16.msra.mxu0 0
      %394 = vmatpush.bf16.msra.mxu0 0
      %395 = vmatpush.bf16.msra.mxu0 0
      %396 = vmatpush.bf16.msra.mxu0 0
      %397 = vmatpush.bf16.msra.mxu0 0
      %398 = vmatpush.bf16.msra.mxu0 0
      %399 = vmatpush.bf16.msra.mxu0 0
      %400 = vmatpush.bf16.msra.mxu0 %v378
      %401 = vmatmul.bf16.gmra.mxu0 %v371
      %v402 = vpop.f32.mrf.mxu0
      %v403 = vadd.f32 0.0, %v402
      %v404 = vpop.f32.mrf.mxu0
      %405 = vdwg.mxu0
      %v407 = vunpack.c.l.b16 %v362
      %v408 = vunpack.c.h.b16 %v362
      %v409 = vpack.c.b16 %v407, %v407
      %v410 = vpack.c.b16 %v408, %v408
      %v412 = vsel %vm369, %v360, 0
      %v415 = vsel %vm373, %v409, 0
      %v418 = vsel %vm373, %v410, 0
      %420 = vmatpush.bf16.msra.mxu0 0
      %421 = vmatpush.bf16.msra.mxu0 0
      %422 = vmatpush.bf16.msra.mxu0 0
      %423 = vmatpush.bf16.msra.mxu0 0
      %424 = vmatpush.bf16.msra.mxu0 0
      %425 = vmatpush.bf16.msra.mxu0 0
      %426 = vmatpush.bf16.msra.mxu0 0
      %427 = vmatpush.bf16.msra.mxu0 %v415
      %428 = vmatmul.bf16.gmra.mxu0 %v412
      %v429 = vpop.f32.mrf.mxu0
      %v430 = vadd.f32 %v390, %v429
      %v431 = vpop.f32.mrf.mxu0
      %432 = vdwg.mxu0
      %433 = vmatpush.bf16.msra.mxu0 0
      %434 = vmatpush.bf16.msra.mxu0 0
      %435 = vmatpush.bf16.msra.mxu0 0
      %436 = vmatpush.bf16.msra.mxu0 0
      %437 = vmatpush.bf16.msra.mxu0 0
      %438 = vmatpush.bf16.msra.mxu0 0
      %439 = vmatpush.bf16.msra.mxu0 0
      %440 = vmatpush.bf16.msra.mxu0 %v418
      %441 = vmatmul.bf16.gmra.mxu0 %v412
      %v442 = vpop.f32.mrf.mxu0
      %v443 = vadd.f32 %v403, %v442
      %v444 = vpop.f32.mrf.mxu0
      %445 = vdwg.mxu0
      %v446 = vld [vmem:[%s5] sm:$0xf]
      %448 = vset.pattern.permute.xlu0 0
      %449 = vperm.xlu0 %448, %v446
      %v450 = vpop.permute.xlu0 %449
      %v452 = vadd.f32 %v430, %v450
      %v453 = vadd.f32 %v443, %v450
      %v454 = vmax.f32 %v452, 0.0
      %v455 = vmax.f32 %v453, 0.0
      %v456 = vld [vmem:[%s4] sm:$0x1]
      %s457 = sld [smem:[#allocation2]]
      %v458 = vstv %s457
      %vm459 = vcmask 31744
      %v461 = vsel %vm459, %v456, 0
      %v464 = vsel %vm373, %v454, 0
      %v467 = vsel %vm373, %v455, 0
      %469 = vmatpush.msra.mxu0 0.0
      %470 = vmatpush.msra.mxu0 0.0
      %471 = vmatpush.msra.mxu0 0.0
      %472 = vmatpush.msra.mxu0 0.0
      %473 = vmatpush.msra.mxu0 0.0
      %474 = vmatpush.msra.mxu0 0.0
      %475 = vmatpush.msra.mxu0 0.0
      %476 = vmatpush.msra.mxu0 0.0
      %477 = vmatpush.msra.mxu0 0.0
      %478 = vmatpush.msra.mxu0 0.0
      %479 = vmatpush.msra.mxu0 0.0
      %480 = vmatpush.msra.mxu0 0.0
      %481 = vmatpush.msra.mxu0 0.0
      %482 = vmatpush.msra.mxu0 0.0
      %483 = vmatpush.msra.mxu0 0.0
      %484 = vmatpush.msra.mxu0 %v464
      %485 = vmatmul.f32.gmra.mxu0 %v461
      %v486 = vpop.f32.mrf.mxu0
      %v487 = vadd.f32 %v458, %v486
      %488 = vdwg.mxu0
      %489 = vmatpush.msra.mxu0 0.0
      %490 = vmatpush.msra.mxu0 0.0
      %491 = vmatpush.msra.mxu0 0.0
      %492 = vmatpush.msra.mxu0 0.0
      %493 = vmatpush.msra.mxu0 0.0
      %494 = vmatpush.msra.mxu0 0.0
      %495 = vmatpush.msra.mxu0 0.0
      %496 = vmatpush.msra.mxu0 0.0
      %497 = vmatpush.msra.mxu0 0.0
      %498 = vmatpush.msra.mxu0 0.0
      %499 = vmatpush.msra.mxu0 0.0
      %500 = vmatpush.msra.mxu0 0.0
      %501 = vmatpush.msra.mxu0 0.0
      %502 = vmatpush.msra.mxu0 0.0
      %503 = vmatpush.msra.mxu0 0.0
      %504 = vmatpush.msra.mxu0 %v467
      %505 = vmatmul.f32.gmra.mxu0 %v461
      %v506 = vpop.f32.mrf.mxu0
      %v507 = vadd.f32 %v458, %v506
      %508 = vdwg.mxu0
      %v509 = vxor.u32 %v487, 2147483648
      %v510 = vxor.u32 %v507, 2147483648
      %v511 = vmul.f32 %v509, 1.442695
      %v512 = vpow.pop %v511
      %v513 = vmul.f32 %v510, 1.442695
      %v514 = vpow.pop %v513
      %v515 = vadd.f32 %v512, 1.0
      %v516 = vadd.f32 %v514, 1.0
      %v517 = vrcp.pop %v515
      %v518 = vmul.f32 %v515, %v517
      %v519 = vsub.f32 1.0, %v518
      %v520 = vmul.f32 %v517, %v519
      %v521 = vadd.f32 %v517, %v520
      %vm522 = vweird.f32 %v515
      %vm523 = vweird.f32 %v517
      %vm524 = vmor %vm522, %vm523
      %v525 = vsel %vm524, %v517, %v521
      %v526 = vand.u32 2147483647, %v515
      %vm527 = vcmp.eq.f32.partialorder %v526, 8.507059e+37
      %v528 = vand.u32 %v515, 2147483648
      %v529 = vor.u32 1.1754944e-38, %v528
      %v530 = vsel %vm527, %v529, %v525
      %v531 = vmul.f32 1.0, %v530
      %v532 = vrcp.pop %v516
      %v533 = vmul.f32 %v516, %v532
      %v534 = vsub.f32 1.0, %v533
      %v535 = vmul.f32 %v532, %v534
      %v536 = vadd.f32 %v532, %v535
      %vm537 = vweird.f32 %v516
      %vm538 = vweird.f32 %v532
      %vm539 = vmor %vm537, %vm538
      %v540 = vsel %vm539, %v532, %v536
      %v541 = vand.u32 2147483647, %v516
      %vm542 = vcmp.eq.f32.partialorder %v541, 8.507059e+37
      %v543 = vand.u32 %v516, 2147483648
      %v544 = vor.u32 1.1754944e-38, %v543
      %v545 = vsel %vm542, %v544, %v540
      %v546 = vmul.f32 1.0, %v545
      %v547 = vperm.slane %v531, 0
      %v548 = vperm.slane %v546, 0
      %v549 = vmul.f32 %v358, %v547
      %v550 = vmul.f32 %v359, %v548
      %551 = vst [vmem:[%s353] sm:$0xff] %v549
      %552 = vst [vmem:[%s353 + $0x8] sm:$0xff] %v550
      %s553 = smul.u32 2, %s24
      %p554 = scmp.lt.s32.totalorder %s23, 1
      %s555 = scalar_select %p554, %s23, 1
      %p556 = scmp.lt.s32.totalorder %s553, 1
      %s557 = scalar_select %p556, %s553, 1
      %s558 = smul.addr %s555, 2
      %s559 = sadd.s32 %s557, %s558
      %s560 = smul.addr %s559, 8
      %s561 = scalar_lea.vmem %s7, %s560
      // Predicated region
      $region49: #{attention_forward.1} parent=47 // pred_check
        %p562 = pneg %p212
      $region50: #{attention_forward.1} parent=47 // pred_check_branch
        %564 = sbr.rel (%p562) target = $region52
      $region51: #{attention_forward.1} parent=47 // pred_region
        %s565 = smul.u32 2, %s24
      $region52: #{attention_forward.1} parent=47 // pred_fallthru
        _
    $region48: #{attention_forward.1} parent=5 // pred_fallthru
      _
    %p566 = scmp.le.s32.totalorder 2, %s14
    // Predicated region
    $region53: #{attention_forward.1} parent=5 // pred_check
      %p567 = pneg %p566
    $region54: #{attention_forward.1} parent=5 // pred_check_branch
      %569 = sbr.rel (%p567) target = $region56
    $region55: #{attention_forward.1} parent=5 // pred_region
      %s570 = ssub.s32 %s14, 2
      // Predicated region
      $region57: #{attention_forward.1} parent=55 // pred_check
        %p571 = pneg %p218
      $region58: #{attention_forward.1} parent=55 // pred_check_branch
        %573 = sbr.rel (%p571) target = $region60
      $region59: #{attention_forward.1} parent=55 // pred_region
        %s574 = smul.u32 2, %s26
        %p575 = scmp.lt.s32.totalorder %s25, 1
        %s576 = scalar_select %p575, %s25, 1
        %p577 = scmp.lt.s32.totalorder %s574, 1
        %s578 = scalar_select %p577, %s574, 1
        %s579 = smul.addr %s576, 2
        %s580 = sadd.s32 %s578, %s579
        %s581 = smul.addr %s580, 8
        %s582 = scalar_lea.vmem %s7, %s581
      $region60: #{attention_forward.1} parent=55 // pred_fallthru
        _
    $region56: #{attention_forward.1} parent=5 // pred_fallthru
      _
  $region6: #{attention_forward.1} parent=0 // loop_footer
    %s18 = sadd.s32 1, %s14
  $region7: #{attention_forward.1} parent=0 // loop_footer_branch
    %13 = sbr.rel target = $region3
  $region8: #{attention_forward.1} parent=0 // loop_exit
    _

</llo_original>
